<compile_context>
chip_gen: v5e
topology: v5e:2x2
jax: 0.10.0
libtpu: 0.0.40
codegen_flags: <defaults>
</compile_context>

<pallas_src>
import math

import jax
import jax.numpy as jnp
from jax.experimental import pallas as pl
from jax.experimental.pallas import tpu as pltpu

D_MODEL = 48
MAX_LEN = 512
_LANES = 128
_SUBLANES = 8


def build_pe_table(d_model=D_MODEL, max_len=MAX_LEN):
    """Mirror of PositionalEmbedding.__init__ (the registered constant buffer).

    Returns the table in a lane-dense layout: the row-major flattened
    (max_len, d_model) f32 buffer reshaped to (n_rows, 128), padded (with
    zeros) to a whole number of (8, 128) vreg tiles.  For (512, 48) this is an
    exact, padding-free (192, 128) view of the same bytes.
    """
    assert d_model % 2 == 0, "module (like the PyTorch original) needs even d_model"
    position = jnp.arange(max_len, dtype=jnp.float32)[:, None]            # (L, 1)
    div_term = jnp.exp(
        jnp.arange(0, d_model, 2, dtype=jnp.float32) * (-math.log(10000.0) / d_model)
    )                                                                     # (D/2,)
    angles = position * div_term[None, :]                                 # (L, D/2)
    pe = jnp.zeros((max_len, d_model), jnp.float32)
    pe = pe.at[:, 0::2].set(jnp.sin(angles))
    pe = pe.at[:, 1::2].set(jnp.cos(angles))
    flat = pe.reshape(-1)                                                 # row-major
    pad = (-flat.size) % (_SUBLANES * _LANES)
    if pad:
        flat = jnp.concatenate([flat, jnp.zeros((pad,), jnp.float32)])
    return flat.reshape(-1, _LANES)                                       # (n_rows, 128)


def _pe_copy_kernel(pe_ref, o_ref):
    # Whole-array refs in VMEM; copy the first out-rows of the lane-dense slab.
    n = o_ref.shape[0]            # static
    o_ref[...] = pe_ref[:n, :]


def positional_embedding_forward(x, pe_table_2d, d_model=D_MODEL, max_len=MAX_LEN):
    """forward(x) -> pe[:, :x.shape[1], :]  with shape (1, seq_len, d_model)."""
    seq_len = x.shape[1]                       # static shape; x's values are unused
    assert seq_len <= max_len

    max_rows = pe_table_2d.shape[0]
    n_elems = seq_len * d_model
    n_rows = -(-n_elems // _LANES)                     # ceil(S*D / 128)
    n_rows = -(-n_rows // _SUBLANES) * _SUBLANES       # round up to sublane multiple
    n_rows = min(n_rows, max_rows)                     # never exceed the table

    slab = pl.pallas_call(
        _pe_copy_kernel,
        out_shape=jax.ShapeDtypeStruct((n_rows, _LANES), jnp.float32),
        in_specs=[pl.BlockSpec(memory_space=pltpu.MemorySpace.VMEM)],
        out_specs=pl.BlockSpec(memory_space=pltpu.MemorySpace.VMEM),
    )(pe_table_2d)

    # Free row-major layout plumbing back to the module's contract shape.
    return slab.reshape(-1)[:n_elems].reshape(1, seq_len, d_model)


def reference_forward(x, d_model=D_MODEL):
    """Independent recomputation of the torch formula (separate code path)."""
    seq_len = x.shape[1]
    pos = jnp.arange(seq_len, dtype=jnp.float32)[:, None]                 # (S, 1)
    col = jnp.arange(d_model)[None, :]                                    # (1, D)
    pair = (col - col % 2).astype(jnp.float32)                            # 2*(j//2)
    angle = pos * jnp.exp(pair * (-math.log(10000.0) / d_model))
    val = jnp.where(col % 2 == 0, jnp.sin(angle), jnp.cos(angle))
    return val[None]                                                      # (1, S, D)


if __name__ == "__main__":
    key = jax.random.PRNGKey(0)
    B, S = 2, 8
    # Token-id style input; forward only uses x.shape[1], exactly as in PyTorch.
    x = jax.random.randint(key, (B, S), 0, 1000, dtype=jnp.int32)

    pe_table = build_pe_table(D_MODEL, MAX_LEN)        # register_buffer equivalent
    out = positional_embedding_forward(x, pe_table, D_MODEL, MAX_LEN)
    out = jax.block_until_ready(out)

    ref = reference_forward(x, D_MODEL)
    assert out.shape == (1, S, D_MODEL)
    assert jnp.max(jnp.abs(out - ref)) < 1e-5, "mismatch vs reference"

    print("KERNEL_OK")
</pallas_src>

<mosaic_0001>
module attributes {stable_mosaic.version = 11 : i64} {
  func.func @_pe_copy_kernel(%arg0: memref<192x128xf32, #tpu.memory_space<vmem>>, %arg1: memref<8x128xf32, #tpu.memory_space<vmem>>) attributes {dimension_semantics = [], scalar_prefetch = 0 : i64, scratch_operands = 0 : i64, tpu.core_type = #tpu.core_type<tc>} {
    %c0 = arith.constant 0 : index
    %c0_0 = arith.constant 0 : index
    %0 = vector.load %arg0[%c0, %c0_0] : memref<192x128xf32, #tpu.memory_space<vmem>>, vector<8x128xf32>
    %c0_1 = arith.constant 0 : index
    %c0_2 = arith.constant 0 : index
    %1 = vector.load %arg1[%c0_1, %c0_2] : memref<8x128xf32, #tpu.memory_space<vmem>>, vector<8x128xf32>
    tpu.vector_store %arg1[%c0_1, %c0_2], %0 {strides = array<i32>} : memref<8x128xf32, #tpu.memory_space<vmem>>, vector<8x128xf32>,
    return
  }
}

</mosaic_0001>

<llo_original>
// kernel: tpu_custom_call.1
$region0: #{tpu_custom_call.1}
  #allocation0 [shape = 'u32[]', space=smem, size = 0x4, offset = 0x4, fixed_abs, tag = 'smem constant byte address 0x4 - core index']
  #allocation1 [shape = 'u32[72,128]{1,0:T(1,128)}', space=vmem, size = 0x9000, scoped, tag = 'internal scratch']
  %s0 = inlined_call_operand.hbm [shape: f32[192,128], index: 0, kind: input, shape index: {}]
  %s1 = inlined_call_operand.hbm [shape: f32[8,128], index: 1, kind: output, shape index: {}]
  %s2 = sld [smem:[#allocation0]]
  $region18: #{tpu_custom_call.1} parent=0
    _
  %s4 = ssub.s32 1, %s2
  %s5 = scalar_select 0, %s4, %s2
  $region1: #{tpu_custom_call.1} parent=0
    #allocation2 [shape = 'u8[98304]{0}', space=vmem, size = 0x18000, scoped, tag = 'input window, operand 0, single buffered']
    #allocation3 [shape = 's32[1]{0}', space=sflag, size = 0x4, scoped, tag = 'scoped memory for tpu_custom_call.1']
    #allocation4 [shape = 's32[1]{0}', space=sflag, size = 0x4, scoped, tag = 'scoped memory for tpu_custom_call.1']
    #allocation5 [shape = 'u8[4096]{0}', space=vmem, size = 0x1000, scoped, tag = 'output window, operand 0, single buffered']
    %6 = vsyncpa [#allocation3], 0
    %7 = vsyncpa [#allocation4], 0
    // Predicated region
    $region2: #{tpu_custom_call.1} parent=1 // pred_check
      _
    $region3: #{tpu_custom_call.1} parent=1 // pred_check_branch
      %9 = sbr.rel (0) target = $region5
    $region4: #{tpu_custom_call.1} parent=1 // pred_region
      %11 = vsyncadd [#allocation3], 0
      %s12 = sshll.u32 %s0, 4
      %s13 = int_to_ptr.hbm [resolvable:$true] %s12
      %s14 = sshll.u32 [#allocation2], 4
      %s15 = int_to_ptr.vmem [resolvable:$true] %s14
      %20 = dma.hbm_to_vmem [thread:$0]  %s13, 3072, %s15, [#allocation3], 128, 128, 8
    $region5: #{tpu_custom_call.1} parent=1 // pred_fallthru
      _
    // Predicated region
    $region6: #{tpu_custom_call.1} parent=1 // pred_check
      _
    $region7: #{tpu_custom_call.1} parent=1 // pred_check_branch
      %22 = sbr.rel (0) target = $region9
    $region8: #{tpu_custom_call.1} parent=1 // pred_region
      %24 = dma.done [#allocation3], 3072
    $region9: #{tpu_custom_call.1} parent=1 // pred_fallthru
      _
    %v25 = vld [vmem:[#allocation2] sm:$0xff]
    %26 = vst [vmem:[#allocation5] sm:$0xff] %v25
    // Predicated region
    $region10: #{tpu_custom_call.1} parent=1 // pred_check
      _
    $region11: #{tpu_custom_call.1} parent=1 // pred_check_branch
      %28 = sbr.rel (0) target = $region13
    $region12: #{tpu_custom_call.1} parent=1 // pred_region
      %30 = vsyncadd [#allocation4], 0
      %s32 = sshll.u32 [#allocation5], 4
      %s33 = int_to_ptr.vmem [resolvable:$true] %s32
      %s34 = sshll.u32 %s1, 4
      %s35 = int_to_ptr.hbm [resolvable:$true] %s34
      %37 = dma.vmem_to_hbm [thread:$0]  %s33, 128, %s35, [#allocation4]
    $region13: #{tpu_custom_call.1} parent=1 // pred_fallthru
      _
    // Predicated region
    $region14: #{tpu_custom_call.1} parent=1 // pred_check
      _
    $region15: #{tpu_custom_call.1} parent=1 // pred_check_branch
      %39 = sbr.rel (0) target = $region17
    $region16: #{tpu_custom_call.1} parent=1 // pred_region
      %41 = dma.done [#allocation4], 128
    $region17: #{tpu_custom_call.1} parent=1 // pred_fallthru
      _
    %42 = vsyncpa [#allocation3], 1
    %43 = vsyncpa [#allocation4], 1

</llo_original>
